<compile_context>
chip_gen: v6e
topology: v6e:2x2x1
jax: 0.10.0
libtpu: 0.0.40
codegen_flags: <defaults>
</compile_context>

<pallas_src>
import jax
import jax.numpy as jnp
from jax.experimental import pallas as pl
from jax.experimental.pallas import tpu as pltpu

_LANE = 128
_SUB = 8


def _default_num_cores():
    # v7x has 2 TensorCores per chip; v5e/v6e have 1, where an extra
    # "parallel" split only adds a wasted duplicate-block DMA.
    try:
        kind = jax.devices()[0].device_kind.lower()
    except Exception:
        return 1
    return 2 if "v7" in kind else 1


def h_mse_loss(prediction, gt, *, tile_rows=None, num_cores=None):
    """Masked MSE: mean((prediction - gt)[gt > -100] ** 2).

    Returns NaN when the mask is empty (matches torch.mean over an empty
    selection).
    """
    pred_flat = prediction.reshape(-1)
    gt_flat = gt.reshape(-1)
    n = pred_flat.shape[0]
    # In-kernel flat-index masking uses int32; guard very large tensors.
    assert n < 2**31, "h_mse_loss: tensor too large for int32 index masking"

    # Native sublane packing: (8,128) for f32, (16,128) for bf16/f16.
    pack = max(
        1,
        4 // pred_flat.dtype.itemsize,
        4 // gt_flat.dtype.itemsize,
    )
    sub_align = _SUB * pack
    unit = sub_align * _LANE

    # Pad only when numel is not a multiple of the native tile so the flat->2D
    # reshape is layout-free and rows stay tile-aligned.  Padded elements are
    # excluded in-kernel by index masking (pad value irrelevant).
    n_aligned = pl.cdiv(n, unit) * unit
    if n_aligned != n:
        pad = n_aligned - n
        pred_flat = jnp.pad(pred_flat, (0, pad))
        gt_flat = jnp.pad(gt_flat, (0, pad))

    rows = n_aligned // _LANE  # multiple of sub_align

    if tile_rows is None:
        # ~4 MiB per input per pipeline buffer on every dtype.
        tile_rows = 8192 * pack
    tile_rows = min(tile_rows, rows)
    tile_rows = max(sub_align, (tile_rows // sub_align) * sub_align)

    nblocks = pl.cdiv(rows, tile_rows)
    nc = _default_num_cores() if num_cores is None else num_cores
    nc = max(1, min(nc, nblocks))
    steps = pl.cdiv(nblocks, nc)

    pred2 = pred_flat.reshape(rows, _LANE)
    gt2 = gt_flat.reshape(rows, _LANE)

    def kernel(pred_ref, gt_ref, sum_ref, cnt_ref):
        c = pl.program_id(0)   # "parallel" axis (megacore on v7x)
        i = pl.program_id(1)   # "arbitrary" reduction axis
        b = c * steps + i      # logical (unclamped) block index

        # Resident per-core accumulators: init on first reduction step.
        @pl.when(i == 0)
        def _():
            sum_ref[...] = jnp.zeros_like(sum_ref)
            cnt_ref[...] = jnp.zeros_like(cnt_ref)

        # Cast in-kernel (inputs may be bf16); accumulate in f32.
        pred = pred_ref[...].astype(jnp.float32)
        g = gt_ref[...].astype(jnp.float32)

        def accumulate(valid):
            err = pred - g
            # jnp.where select semantics also quash NaN/Inf from stale tail
            # rows of the last (partially-DMAed) block.
            sq = jnp.where(valid, err * err, 0.0)
            cnt = valid.astype(jnp.float32)
            # Fold (tile_rows,128) -> (8,128) with pure vreg (VPU) adds; keep
            # the accumulators lane-dense.  Cross-lane reduce happens once,
            # outside the kernel.
            sum_ref[...] += sq.reshape(-1, _SUB, _LANE).sum(axis=0)
            cnt_ref[...] += cnt.reshape(-1, _SUB, _LANE).sum(axis=0)

        # Fast path: interior blocks are entirely valid data, so only the
        # gt > -100 mask is needed -- no per-element index arithmetic.
        @pl.when(b < nblocks - 1)
        def _():
            accumulate(g > -100.0)

        # Edge path: the last block (tail rows / alignment padding / stale
        # VMEM rows) and clamped duplicate blocks additionally mask on the
        # logical flat element index (unclamped b, so duplicates mask to 0).
        @pl.when(b >= nblocks - 1)
        def _():
            row0 = b * tile_rows
            row_idx = row0 + jax.lax.broadcasted_iota(jnp.int32, pred.shape, 0)
            lane_idx = jax.lax.broadcasted_iota(jnp.int32, pred.shape, 1)
            flat_idx = row_idx * _LANE + lane_idx
            accumulate(jnp.logical_and(flat_idx < n, g > -100.0))

    def in_map(c, i):
        # Clamp so DMAs stay in bounds; clamped (duplicate) blocks contribute
        # nothing because of the in-kernel index masking.
        return (jnp.minimum(c * steps + i, nblocks - 1), 0)

    bytes_per_elem = pred2.dtype.itemsize + gt2.dtype.itemsize
    cost = pl.CostEstimate(
        flops=5 * n, transcendentals=0, bytes_accessed=n * bytes_per_elem
    )

    # 2 double-buffered input blocks + tiny outputs.  >= 32 MiB so the default
    # tile fits on v5e (16 MiB default scoped VMEM); <= 48 MiB to stay inside
    # v7x's 64 MiB per-core physical VMEM.
    block_bytes = tile_rows * _LANE * bytes_per_elem
    vmem_limit = int(min(max(32 << 20, 2 * block_bytes + (4 << 20)), 48 << 20))

    sum_out, cnt_out = pl.pallas_call(
        kernel,
        out_shape=(
            jax.ShapeDtypeStruct((nc * _SUB, _LANE), jnp.float32),
            jax.ShapeDtypeStruct((nc * _SUB, _LANE), jnp.float32),
        ),
        grid_spec=pltpu.PrefetchScalarGridSpec(
            num_scalar_prefetch=0,
            grid=(nc, steps),
            in_specs=[
                pl.BlockSpec((tile_rows, _LANE), in_map),
                pl.BlockSpec((tile_rows, _LANE), in_map),
            ],
            out_specs=[
                pl.BlockSpec((_SUB, _LANE), lambda c, i: (c, 0)),
                pl.BlockSpec((_SUB, _LANE), lambda c, i: (c, 0)),
            ],
        ),
        compiler_params=pltpu.CompilerParams(
            dimension_semantics=("parallel", "arbitrary"),
            vmem_limit_bytes=vmem_limit,
        ),
        cost_estimate=cost,
    )(pred2, gt2)

    # Tiny final reduction of the per-core lane-dense partials.
    return jnp.sum(sum_out) / jnp.sum(cnt_out)


def _reference(prediction, gt):
    p = prediction.astype(jnp.float32)
    g = gt.astype(jnp.float32)
    mask = g > -100.0
    err = p - g
    return jnp.sum(jnp.where(mask, err * err, 0.0)) / jnp.sum(
        mask.astype(jnp.float32)
    )


if __name__ == "__main__":
    key = jax.random.PRNGKey(0)
    k1, k2, k3, k4, k5, k6 = jax.random.split(key, 6)

    # Case 1: small NCHW f32 inputs (aligned; single edge block path).
    B, C, H, W = 2, 4, 16, 16
    prediction = jax.random.normal(k1, (B, C, H, W), dtype=jnp.float32)
    gt = jax.random.normal(k2, (B, C, H, W), dtype=jnp.float32)
    invalid = jax.random.uniform(k3, (B, C, H, W)) < 0.25
    gt = jnp.where(invalid, jnp.float32(-1000.0), gt)

    loss = jax.block_until_ready(h_mse_loss(prediction, gt))
    ref = _reference(prediction, gt)
    assert jnp.allclose(loss, ref, rtol=1e-5, atol=1e-6), (loss, ref)

    # Case 2: ragged size (exercises alignment pad + edge-block index mask).
    shape2 = (2, 3, 7, 11)  # 462 elements, not a multiple of 128
    p2 = jax.random.normal(k4, shape2, dtype=jnp.float32)
    g2 = jax.random.normal(k5, shape2, dtype=jnp.float32)
    inv2 = jax.random.uniform(k6, shape2) < 0.3
    g2 = jnp.where(inv2, jnp.float32(-500.0), g2)

    loss2 = jax.block_until_ready(h_mse_loss(p2, g2))
    ref2 = _reference(p2, g2)
    assert jnp.allclose(loss2, ref2, rtol=1e-5, atol=1e-6), (loss2, ref2)

    # Case 3: bf16 inputs (in-kernel cast, (16,128)-native alignment path).
    p3 = prediction.astype(jnp.bfloat16)
    g3 = gt.astype(jnp.bfloat16)
    loss3 = jax.block_until_ready(h_mse_loss(p3, g3))
    ref3 = _reference(p3, g3)
    assert jnp.allclose(loss3, ref3, rtol=1e-5, atol=1e-6), (loss3, ref3)

    # Case 4: force multiple blocks (fast interior path) on a single core.
    loss4 = jax.block_until_ready(
        h_mse_loss(prediction, gt, tile_rows=8, num_cores=1)
    )
    assert jnp.allclose(loss4, ref, rtol=1e-5, atol=1e-6), (loss4, ref)

    # Case 5: 2-core parallel split (fast path on core 0, edge path on core 1;
    # exercises clamped-duplicate handling on single-TC chips too).
    loss5 = jax.block_until_ready(
        h_mse_loss(prediction, gt, tile_rows=8, num_cores=2)
    )
    assert jnp.allclose(loss5, ref, rtol=1e-5, atol=1e-6), (loss5, ref)

    print("KERNEL_OK")
</pallas_src>

<mosaic_0001>
module attributes {stable_mosaic.version = 11 : i64} {
  func.func @kernel(%arg0: i32, %arg1: i32, %arg2: memref<16x128xf32, #tpu.memory_space<vmem>>, %arg3: memref<16x128xf32, #tpu.memory_space<vmem>>, %arg4: memref<8x128xf32, #tpu.memory_space<vmem>>, %arg5: memref<8x128xf32, #tpu.memory_space<vmem>>) attributes {dimension_semantics = [#tpu.dimension_semantics<parallel>, #tpu.dimension_semantics<arbitrary>], iteration_bounds = array<i64: 1, 1>, scalar_prefetch = 0 : i64, scratch_operands = 0 : i64, tpu.core_type = #tpu.core_type<tc>, window_params = [{transform_indices = @transform_0, window_bounds = array<i64: 16, 128>}, {transform_indices = @transform_1, window_bounds = array<i64: 16, 128>}, {transform_indices = @transform_2, window_bounds = array<i64: 8, 128>}, {transform_indices = @transform_3, window_bounds = array<i64: 8, 128>}]} {
    %c1_i32 = arith.constant 1 : i32
    %0 = arith.muli %arg0, %c1_i32 : i32
    %1 = arith.addi %0, %arg1 : i32
    %c0_i32 = arith.constant 0 : i32
    %2 = arith.cmpi eq, %arg1, %c0_i32 : i32
    %3 = arith.extui %2 : i1 to i32
    %c0_i32_0 = arith.constant 0 : i32
    %4 = arith.cmpi ne, %3, %c0_i32_0 : i32
    scf.if %4 {
      %cst = arith.constant 0.000000e+00 : f32
      %13 = vector.broadcast %cst : f32 to vector<8x128xf32>
      %c0_8 = arith.constant 0 : index
      %c0_9 = arith.constant 0 : index
      %14 = vector.load %arg4[%c0_8, %c0_9] : memref<8x128xf32, #tpu.memory_space<vmem>>, vector<8x128xf32>
      tpu.vector_store %arg4[%c0_8, %c0_9], %13 {strides = array<i32>} : memref<8x128xf32, #tpu.memory_space<vmem>>, vector<8x128xf32>,
      %cst_10 = arith.constant 0.000000e+00 : f32
      %15 = vector.broadcast %cst_10 : f32 to vector<8x128xf32>
      %c0_11 = arith.constant 0 : index
      %c0_12 = arith.constant 0 : index
      %16 = vector.load %arg5[%c0_11, %c0_12] : memref<8x128xf32, #tpu.memory_space<vmem>>, vector<8x128xf32>
      tpu.vector_store %arg5[%c0_11, %c0_12], %15 {strides = array<i32>} : memref<8x128xf32, #tpu.memory_space<vmem>>, vector<8x128xf32>,
    } else {
    }
    %c0 = arith.constant 0 : index
    %c0_1 = arith.constant 0 : index
    %5 = vector.load %arg2[%c0, %c0_1] : memref<16x128xf32, #tpu.memory_space<vmem>>, vector<16x128xf32>
    %c0_2 = arith.constant 0 : index
    %c0_3 = arith.constant 0 : index
    %6 = vector.load %arg3[%c0_2, %c0_3] : memref<16x128xf32, #tpu.memory_space<vmem>>, vector<16x128xf32>
    %c0_i32_4 = arith.constant 0 : i32
    %7 = arith.cmpi slt, %1, %c0_i32_4 : i32
    %8 = arith.extui %7 : i1 to i32
    %c0_i32_5 = arith.constant 0 : i32
    %9 = arith.cmpi ne, %8, %c0_i32_5 : i32
    scf.if %9 {
      %cst = arith.constant -1.000000e+02 : f32
      %13 = vector.broadcast %cst : f32 to vector<16x128xf32>
      %14 = arith.cmpf ogt, %6, %13 : vector<16x128xf32>
      %15 = arith.subf %5, %6 : vector<16x128xf32>
      %16 = arith.mulf %15, %15 : vector<16x128xf32>
      %cst_8 = arith.constant 0.000000e+00 : f32
      %17 = vector.broadcast %cst_8 : f32 to vector<16x128xf32>
      %18 = arith.select %14, %16, %17 : vector<16x128xi1>, vector<16x128xf32>
      %19 = arith.extui %14 : vector<16x128xi1> to vector<16x128xi32>
      %20 = arith.sitofp %19 : vector<16x128xi32> to vector<16x128xf32>
      %c0_9 = arith.constant 0 : index
      %c0_10 = arith.constant 0 : index
      %21 = vector.load %arg4[%c0_9, %c0_10] : memref<8x128xf32, #tpu.memory_space<vmem>>, vector<8x128xf32>
      %22 = vector.shape_cast %18 : vector<16x128xf32> to vector<2x8x128xf32>
      %cst_11 = arith.constant dense<0.000000e+00> : vector<8x128xf32>
      %23 = vector.multi_reduction <add>, %22, %cst_11 [0] : vector<2x8x128xf32> to vector<8x128xf32>
      %24 = arith.addf %21, %23 : vector<8x128xf32>
      %c0_12 = arith.constant 0 : index
      %c0_13 = arith.constant 0 : index
      %25 = vector.load %arg4[%c0_12, %c0_13] : memref<8x128xf32, #tpu.memory_space<vmem>>, vector<8x128xf32>
      tpu.vector_store %arg4[%c0_12, %c0_13], %24 {strides = array<i32>} : memref<8x128xf32, #tpu.memory_space<vmem>>, vector<8x128xf32>,
      %c0_14 = arith.constant 0 : index
      %c0_15 = arith.constant 0 : index
      %26 = vector.load %arg5[%c0_14, %c0_15] : memref<8x128xf32, #tpu.memory_space<vmem>>, vector<8x128xf32>
      %27 = vector.shape_cast %20 : vector<16x128xf32> to vector<2x8x128xf32>
      %cst_16 = arith.constant dense<0.000000e+00> : vector<8x128xf32>
      %28 = vector.multi_reduction <add>, %27, %cst_16 [0] : vector<2x8x128xf32> to vector<8x128xf32>
      %29 = arith.addf %26, %28 : vector<8x128xf32>
      %c0_17 = arith.constant 0 : index
      %c0_18 = arith.constant 0 : index
      %30 = vector.load %arg5[%c0_17, %c0_18] : memref<8x128xf32, #tpu.memory_space<vmem>>, vector<8x128xf32>
      tpu.vector_store %arg5[%c0_17, %c0_18], %29 {strides = array<i32>} : memref<8x128xf32, #tpu.memory_space<vmem>>, vector<8x128xf32>,
    } else {
    }
    %c0_i32_6 = arith.constant 0 : i32
    %10 = arith.cmpi sge, %1, %c0_i32_6 : i32
    %11 = arith.extui %10 : i1 to i32
    %c0_i32_7 = arith.constant 0 : i32
    %12 = arith.cmpi ne, %11, %c0_i32_7 : i32
    scf.if %12 {
      %c16_i32 = arith.constant 16 : i32
      %13 = arith.muli %1, %c16_i32 : i32
      %14 = tpu.iota {dimensions = array<i32: 0>} : vector<16x128xi32>
      %15 = vector.broadcast %13 : i32 to vector<16x128xi32>
      %16 = arith.addi %15, %14 : vector<16x128xi32>
      %17 = tpu.iota {dimensions = array<i32: 1>} : vector<16x128xi32>
      %c128_i32 = arith.constant 128 : i32
      %18 = vector.broadcast %c128_i32 : i32 to vector<16x128xi32>
      %19 = arith.muli %16, %18 : vector<16x128xi32>
      %20 = arith.addi %19, %17 : vector<16x128xi32>
      %c2048_i32 = arith.constant 2048 : i32
      %21 = vector.broadcast %c2048_i32 : i32 to vector<16x128xi32>
      %22 = arith.cmpi slt, %20, %21 : vector<16x128xi32>
      %cst = arith.constant -1.000000e+02 : f32
      %23 = vector.broadcast %cst : f32 to vector<16x128xf32>
      %24 = arith.cmpf ogt, %6, %23 : vector<16x128xf32>
      %25 = arith.andi %22, %24 : vector<16x128xi1>
      %26 = arith.subf %5, %6 : vector<16x128xf32>
      %27 = arith.mulf %26, %26 : vector<16x128xf32>
      %cst_8 = arith.constant 0.000000e+00 : f32
      %28 = vector.broadcast %cst_8 : f32 to vector<16x128xf32>
      %29 = arith.select %25, %27, %28 : vector<16x128xi1>, vector<16x128xf32>
      %30 = arith.extui %25 : vector<16x128xi1> to vector<16x128xi32>
      %31 = arith.sitofp %30 : vector<16x128xi32> to vector<16x128xf32>
      %c0_9 = arith.constant 0 : index
      %c0_10 = arith.constant 0 : index
      %32 = vector.load %arg4[%c0_9, %c0_10] : memref<8x128xf32, #tpu.memory_space<vmem>>, vector<8x128xf32>
      %33 = vector.shape_cast %29 : vector<16x128xf32> to vector<2x8x128xf32>
      %cst_11 = arith.constant dense<0.000000e+00> : vector<8x128xf32>
      %34 = vector.multi_reduction <add>, %33, %cst_11 [0] : vector<2x8x128xf32> to vector<8x128xf32>
      %35 = arith.addf %32, %34 : vector<8x128xf32>
      %c0_12 = arith.constant 0 : index
      %c0_13 = arith.constant 0 : index
      %36 = vector.load %arg4[%c0_12, %c0_13] : memref<8x128xf32, #tpu.memory_space<vmem>>, vector<8x128xf32>
      tpu.vector_store %arg4[%c0_12, %c0_13], %35 {strides = array<i32>} : memref<8x128xf32, #tpu.memory_space<vmem>>, vector<8x128xf32>,
      %c0_14 = arith.constant 0 : index
      %c0_15 = arith.constant 0 : index
      %37 = vector.load %arg5[%c0_14, %c0_15] : memref<8x128xf32, #tpu.memory_space<vmem>>, vector<8x128xf32>
      %38 = vector.shape_cast %31 : vector<16x128xf32> to vector<2x8x128xf32>
      %cst_16 = arith.constant dense<0.000000e+00> : vector<8x128xf32>
      %39 = vector.multi_reduction <add>, %38, %cst_16 [0] : vector<2x8x128xf32> to vector<8x128xf32>
      %40 = arith.addf %37, %39 : vector<8x128xf32>
      %c0_17 = arith.constant 0 : index
      %c0_18 = arith.constant 0 : index
      %41 = vector.load %arg5[%c0_17, %c0_18] : memref<8x128xf32, #tpu.memory_space<vmem>>, vector<8x128xf32>
      tpu.vector_store %arg5[%c0_17, %c0_18], %40 {strides = array<i32>} : memref<8x128xf32, #tpu.memory_space<vmem>>, vector<8x128xf32>,
    } else {
    }
    return
  }
  func.func @transform_0(%arg0: i32, %arg1: i32) -> (i32, i32) {
    %c1_i32 = arith.constant 1 : i32
    %0 = arith.muli %arg0, %c1_i32 : i32
    %1 = arith.addi %0, %arg1 : i32
    %c0_i32 = arith.constant 0 : i32
    %2 = arith.minsi %1, %c0_i32 : i32
    %c0_i32_0 = arith.constant 0 : i32
    %c0_i32_1 = arith.constant 0 : i32
    return %2, %c0_i32_0 : i32, i32
  }
  func.func @transform_1(%arg0: i32, %arg1: i32) -> (i32, i32) {
    %c1_i32 = arith.constant 1 : i32
    %0 = arith.muli %arg0, %c1_i32 : i32
    %1 = arith.addi %0, %arg1 : i32
    %c0_i32 = arith.constant 0 : i32
    %2 = arith.minsi %1, %c0_i32 : i32
    %c0_i32_0 = arith.constant 0 : i32
    %c0_i32_1 = arith.constant 0 : i32
    return %2, %c0_i32_0 : i32, i32
  }
  func.func @transform_2(%arg0: i32, %arg1: i32) -> (i32, i32) {
    %c0_i32 = arith.constant 0 : i32
    %c0_i32_0 = arith.constant 0 : i32
    return %arg0, %c0_i32 : i32, i32
  }
  func.func @transform_3(%arg0: i32, %arg1: i32) -> (i32, i32) {
    %c0_i32 = arith.constant 0 : i32
    %c0_i32_0 = arith.constant 0 : i32
    return %arg0, %c0_i32 : i32, i32
  }
}

</mosaic_0001>

<llo_original>
// kernel: tpu_custom_call.1
$region0: #{tpu_custom_call.1}
  #allocation0 [shape = 'u32[]', space=smem, size = 0x4, offset = 0x4, fixed_abs, tag = 'smem constant byte address 0x4 - core index']
  #allocation1 [shape = 'u32[144,128]{1,0:T(1,128)}', space=vmem, size = 0x12000, scoped, tag = 'internal scratch']
  %s0 = inlined_call_operand.hbm [shape: f32[16,128], index: 0, kind: input, shape index: {}]
  %s1 = inlined_call_operand.hbm [shape: f32[16,128], index: 1, kind: input, shape index: {}]
  %s2 = inlined_call_operand.hbm [shape: f32[8,128], index: 2, kind: output, shape index: {0}]
  %s3 = inlined_call_operand.hbm [shape: f32[8,128], index: 3, kind: output, shape index: {1}]
  %4 = xla_tuple %s2, %s3
  %s5 = sld [smem:[#allocation0]]
  $region46: #{tpu_custom_call.1} parent=0
    _
  %s7 = ssub.s32 1, %s5
  %s8 = scalar_select 0, %s7, %s5
  $region1: #{tpu_custom_call.1} parent=0
    #allocation2 [shape = 'u8[8192]{0}', space=vmem, size = 0x2000, scoped, tag = 'input window, operand 0, single buffered']
    #allocation3 [shape = 's32[1]{0}', space=sflag, size = 0x4, scoped, tag = 'scoped memory for tpu_custom_call.1']
    #allocation4 [shape = 's32[1]{0}', space=sflag, size = 0x4, scoped, tag = 'scoped memory for tpu_custom_call.1']
    #allocation5 [shape = 'u8[8192]{0}', space=vmem, size = 0x2000, scoped, tag = 'input window, operand 1, single buffered']
    #allocation6 [shape = 's32[1]{0}', space=sflag, size = 0x4, scoped, tag = 'scoped memory for tpu_custom_call.1']
    #allocation7 [shape = 'u8[4096]{0}', space=vmem, size = 0x1000, scoped, tag = 'output window, operand 0, single buffered']
    #allocation8 [shape = 'u8[4096]{0}', space=vmem, size = 0x1000, scoped, tag = 'output window, operand 1, single buffered']
    #allocation9 [shape = 's32[1]{0}', space=sflag, size = 0x4, scoped, tag = 'scoped memory for tpu_custom_call.1']
    %9 = vsyncpa [#allocation3], 0
    %10 = vsyncpa [#allocation6], 0
    %11 = vsyncpa [#allocation4], 0
    %12 = vsyncpa [#allocation9], 0
    // Predicated region
    $region2: #{tpu_custom_call.1} parent=1 // pred_check
      _
    $region3: #{tpu_custom_call.1} parent=1 // pred_check_branch
      %14 = sbr.rel (0) target = $region5
    $region4: #{tpu_custom_call.1} parent=1 // pred_region
      %s15 = sadd.s32 0, 0
      %p16 = scmp.lt.s32.totalorder %s15, 0
      %s17 = scalar_select %p16, %s15, 0
      %s18 = smul.u32 2, %s17
      %s20 = ssub.s32 256, 256
      %21 = vsyncadd [#allocation3], %s20
      %s22 = smul.addr %s18, 128
      %s23 = scalar_lea.hbm %s0, %s22
      %s24 = sshll.u32 [#allocation2], 4
      %s25 = int_to_ptr.vmem [resolvable:$true] %s24
      %30 = dma.hbm_to_vmem [thread:$0]  %s23, 256, %s25, [#allocation3], 128, 128, 8
    $region5: #{tpu_custom_call.1} parent=1 // pred_fallthru
      _
    // Predicated region
    $region6: #{tpu_custom_call.1} parent=1 // pred_check
      _
    $region7: #{tpu_custom_call.1} parent=1 // pred_check_branch
      %32 = sbr.rel (0) target = $region9
    $region8: #{tpu_custom_call.1} parent=1 // pred_region
      %s33 = sadd.s32 0, 0
      %p34 = scmp.lt.s32.totalorder %s33, 0
      %s35 = scalar_select %p34, %s33, 0
      %s36 = smul.u32 2, %s35
      %s38 = ssub.s32 256, 256
      %39 = vsyncadd [#allocation6], %s38
      %s40 = smul.addr %s36, 128
      %s41 = scalar_lea.hbm %s1, %s40
      %s42 = sshll.u32 [#allocation5], 4
      %s43 = int_to_ptr.vmem [resolvable:$true] %s42
      %48 = dma.hbm_to_vmem [thread:$0]  %s41, 256, %s43, [#allocation6], 128, 128, 8
    $region9: #{tpu_custom_call.1} parent=1 // pred_fallthru
      _
    // Predicated region
    $region10: #{tpu_custom_call.1} parent=1 // pred_check
      _
    $region11: #{tpu_custom_call.1} parent=1 // pred_check_branch
      %50 = sbr.rel (0) target = $region13
    $region12: #{tpu_custom_call.1} parent=1 // pred_region
      %51 = dma.done [#allocation3], 256
    $region13: #{tpu_custom_call.1} parent=1 // pred_fallthru
      _
    // Predicated region
    $region14: #{tpu_custom_call.1} parent=1 // pred_check
      _
    $region15: #{tpu_custom_call.1} parent=1 // pred_check_branch
      %53 = sbr.rel (0) target = $region17
    $region16: #{tpu_custom_call.1} parent=1 // pred_region
      %54 = dma.done [#allocation6], 256
    $region17: #{tpu_custom_call.1} parent=1 // pred_fallthru
      _
    %s55 = sadd.s32 0, 0
    %p56 = scmp.lt.s32.totalorder %s55, 0
    %s57 = scalar_select %p56, %s55, 0
    %s58 = smul.u32 2, %s57
    %s59 = sadd.s32 0, 0
    %p60 = scmp.lt.s32.totalorder %s59, 0
    %s61 = scalar_select %p60, %s59, 0
    %s62 = smul.u32 2, %s61
    %s63 = sadd.s32 0, 0
    %p64 = scmp.eq.s32.totalorder 0, 0
    // Predicated region
    $region18: #{tpu_custom_call.1} parent=1 // pred_check
      %p65 = pneg %p64
    $region19: #{tpu_custom_call.1} parent=1 // pred_check_branch
      %67 = sbr.rel (%p65) target = $region21
    $region20: #{tpu_custom_call.1} parent=1 // pred_region
      %68 = vst [vmem:[#allocation7] sm:$0xff] 0.0
      %69 = vst [vmem:[#allocation8] sm:$0xff] 0.0
    $region21: #{tpu_custom_call.1} parent=1 // pred_fallthru
      _
    %v70 = vld [vmem:[#allocation2] sm:$0xff]
    %v71 = vld [vmem:[#allocation2 + $0x8] sm:$0xff]
    %v72 = vld [vmem:[#allocation5] sm:$0xff]
    %v73 = vld [vmem:[#allocation5 + $0x8] sm:$0xff]
    %p74 = scmp.lt.s32.totalorder %s63, 0
    // Predicated region
    $region22: #{tpu_custom_call.1} parent=1 // pred_check
      %p75 = pneg %p74
    $region23: #{tpu_custom_call.1} parent=1 // pred_check_branch
      %77 = sbr.rel (%p75) target = $region25
    $region24: #{tpu_custom_call.1} parent=1 // pred_region
      %vm78 = vcmp.gt.f32.partialorder %v72, -100.0
      %vm79 = vcmp.gt.f32.partialorder %v73, -100.0
      %v80 = vsub.f32 %v70, %v72
      %v81 = vsub.f32 %v71, %v73
      %v82 = vmul.f32 %v80, %v80
      %v83 = vmul.f32 %v81, %v81
      %v84 = vsel %vm78, %v82, 0.0
      %v85 = vsel %vm79, %v83, 0.0
      %v86 = vsel %vm78, 1, 0
      %v87 = vsel %vm79, 1, 0
      %v88 = vcvt.s32.f32 %v86
      %v89 = vcvt.s32.f32 %v87
      %v90 = vld [vmem:[#allocation7] sm:$0xff]
      %v91 = vadd.f32 %v84, %v85
      %v92 = vadd.f32 %v90, %v91
      %93 = vst [vmem:[#allocation7] sm:$0xff] %v92
      %v94 = vld [vmem:[#allocation8] sm:$0xff]
      %v95 = vadd.f32 %v88, %v89
      %v96 = vadd.f32 %v94, %v95
      %97 = vst [vmem:[#allocation8] sm:$0xff] %v96
    $region25: #{tpu_custom_call.1} parent=1 // pred_fallthru
      _
    %p98 = scmp.ge.s32.totalorder %s63, 0
    // Predicated region
    $region26: #{tpu_custom_call.1} parent=1 // pred_check
      %p99 = pneg %p98
    $region27: #{tpu_custom_call.1} parent=1 // pred_check_branch
      %101 = sbr.rel (%p99) target = $region29
    $region28: #{tpu_custom_call.1} parent=1 // pred_region
      %s102 = smul.u32 %s63, 16
      %v103 = vlaneseq
      %v104 = vshrl.u32 %v103, 7
      %v105 = vadd.s32 %v104, 8
      %v106 = vstv %s102
      %v107 = vadd.s32 %v106, %v104
      %v108 = vadd.s32 %v106, %v105
      %v109 = vlaneseq
      %v110 = vand.u32 %v109, 127
      %v111 = vmul.u32 %v107, 128
      %v112 = vmul.u32 %v108, 128
      %v113 = vadd.s32 %v111, %v110
      %v114 = vadd.s32 %v112, %v110
      %vm115 = vcmp.lt.s32.totalorder %v113, 2048
      %vm116 = vcmp.lt.s32.totalorder %v114, 2048
      %vm117 = vcmp.gt.f32.partialorder %v72, -100.0
      %vm118 = vcmp.gt.f32.partialorder %v73, -100.0
      %vm119 = vmand %vm115, %vm117
      %vm120 = vmand %vm116, %vm118
      %v121 = vsub.f32 %v70, %v72
      %v122 = vsub.f32 %v71, %v73
      %v123 = vmul.f32 %v121, %v121
      %v124 = vmul.f32 %v122, %v122
      %v125 = vsel %vm119, %v123, 0.0
      %v126 = vsel %vm120, %v124, 0.0
      %v127 = vsel %vm119, 1, 0
      %v128 = vsel %vm120, 1, 0
      %v129 = vcvt.s32.f32 %v127
      %v130 = vcvt.s32.f32 %v128
      %v131 = vld [vmem:[#allocation7] sm:$0xff]
      %v132 = vadd.f32 %v125, %v126
      %v133 = vadd.f32 %v131, %v132
      %134 = vst [vmem:[#allocation7] sm:$0xff] %v133
      %v135 = vld [vmem:[#allocation8] sm:$0xff]
      %v136 = vadd.f32 %v129, %v130
      %v137 = vadd.f32 %v135, %v136
      %138 = vst [vmem:[#allocation8] sm:$0xff] %v137
    $region29: #{tpu_custom_call.1} parent=1 // pred_fallthru
      _
    // Predicated region
    $region30: #{tpu_custom_call.1} parent=1 // pred_check
      _
    $region31: #{tpu_custom_call.1} parent=1 // pred_check_branch
      %140 = sbr.rel (0) target = $region33
    $region32: #{tpu_custom_call.1} parent=1 // pred_region
      %s142 = ssub.s32 128, 128
      %143 = vsyncadd [#allocation4], %s142
      %s145 = sshll.u32 [#allocation7], 4
      %s146 = int_to_ptr.vmem [resolvable:$true] %s145
      %148 = dma.vmem_to_hbm [thread:$0]  %s146, 128, %s2, [#allocation4]
    $region33: #{tpu_custom_call.1} parent=1 // pred_fallthru
      _
    // Predicated region
    $region34: #{tpu_custom_call.1} parent=1 // pred_check
      _
    $region35: #{tpu_custom_call.1} parent=1 // pred_check_branch
      %150 = sbr.rel (0) target = $region37
    $region36: #{tpu_custom_call.1} parent=1 // pred_region
      %s152 = ssub.s32 128, 128
      %153 = vsyncadd [#allocation9], %s152
      %s155 = sshll.u32 [#allocation8], 4
      %s156 = int_to_ptr.vmem [resolvable:$true] %s155
      %158 = dma.vmem_to_hbm [thread:$0]  %s156, 128, %s3, [#allocation9]
    $region37: #{tpu_custom_call.1} parent=1 // pred_fallthru
      _
    // Predicated region
    $region38: #{tpu_custom_call.1} parent=1 // pred_check
      _
    $region39: #{tpu_custom_call.1} parent=1 // pred_check_branch
      %160 = sbr.rel (0) target = $region41
    $region40: #{tpu_custom_call.1} parent=1 // pred_region
      %161 = dma.done [#allocation4], 128
    $region41: #{tpu_custom_call.1} parent=1 // pred_fallthru
      _
    // Predicated region
    $region42: #{tpu_custom_call.1} parent=1 // pred_check
      _
    $region43: #{tpu_custom_call.1} parent=1 // pred_check_branch
      %163 = sbr.rel (0) target = $region45
    $region44: #{tpu_custom_call.1} parent=1 // pred_region
      %164 = dma.done [#allocation9], 128
    $region45: #{tpu_custom_call.1} parent=1 // pred_fallthru
      _
    %165 = vsyncpa [#allocation3], 1
    %166 = vsyncpa [#allocation6], 1
    %167 = vsyncpa [#allocation4], 1
    %168 = vsyncpa [#allocation9], 1

</llo_original>
